<compile_context>
chip_gen: v7x
topology: tpu7x:2x2x1
jax: 0.10.0
libtpu: 0.0.40
codegen_flags: <defaults>
</compile_context>

<pallas_src>
import jax
import jax.numpy as jnp
from jax.experimental import pallas as pl
from jax.experimental.pallas import tpu as pltpu


def _scaling_kernel(x_ref, shift_ref, inv_ref, o_ref):
    # x_ref / o_ref: (TM, TL) tiles; shift_ref / inv_ref: (TM, 1) f32 columns.
    x = x_ref[...].astype(jnp.float32)
    o_ref[...] = ((x - shift_ref[...]) * inv_ref[...]).astype(o_ref.dtype)


def _round_down(x, m):
    return (x // m) * m


def _sublane_unit(dtype):
    # Minimum legal second-to-last tile unit: 8 (f32), 16 (bf16/f16), 32 (int8/fp8).
    itemsize = jnp.dtype(dtype).itemsize
    return max(8, 32 // itemsize)


def _pick_lane_tile(L, cap):
    """Largest lane tile <= cap that is legal (full L or multiple of 128),
    preferring exact divisors of L so every store is an unmasked full vst."""
    if L <= cap:
        return L
    cap = max(_round_down(cap, 128), 128)
    if L % 128 == 0:
        d = cap
        while d >= 128:
            if L % d == 0:
                return d
            d -= 128
    return cap  # partial last block only if L itself isn't 128-aligned


def _pick_tiles(R, L, itemsize, unit_m, budget_bytes=4 * 1024 * 1024):
    # Row tile: full extent when small (always legal), else a legal multiple.
    TM = R if R <= 512 else _round_down(512, unit_m)
    # Lane tile from the byte budget, preferring an exact divisor of L.
    TL = _pick_lane_tile(L, max(budget_bytes // (max(TM, 1) * itemsize), 128))

    # Megacore guard (v7x has 2 TCs): don't let the budget collapse the grid
    # to a single step for mid-sized inputs — keep >=2 (prefer 4) lane steps.
    grid_steps = pl.cdiv(R, TM) * pl.cdiv(L, TL)
    total_bytes = R * L * itemsize
    if grid_steps < 2 and L >= 256 and total_bytes >= (1 << 20):
        steps = 4 if (L >= 512 and total_bytes >= (4 << 20)) else 2
        TL = _pick_lane_tile(L, max(L // steps, 128))
    return TM, TL


def scaling_layer(inp, shift, scale):
    """inp: (N, C, H, W); shift/scale: (C,). Returns (inp - shift) / scale."""
    N, C, H, W = inp.shape
    R, L = N * C, H * W
    itemsize = jnp.dtype(inp.dtype).itemsize

    # Lane-dense 2D view of the image stack.
    x2 = inp.reshape(R, L)

    # Per-row constants (row r -> channel r % C), kept in f32 so the
    # precomputed reciprocal + multiply matches true division for bf16 inputs.
    shift_col = jnp.tile(shift.astype(jnp.float32), N).reshape(R, 1)
    inv_col = jnp.tile((1.0 / scale.astype(jnp.float32)), N).reshape(R, 1)

    TM, TL = _pick_tiles(R, L, itemsize, _sublane_unit(inp.dtype))
    grid = (pl.cdiv(R, TM), pl.cdiv(L, TL))

    out2 = pl.pallas_call(
        _scaling_kernel,
        out_shape=jax.ShapeDtypeStruct((R, L), inp.dtype),
        grid=grid,
        in_specs=[
            pl.BlockSpec((TM, TL), lambda i, j: (i, j)),
            pl.BlockSpec((TM, 1), lambda i, j: (i, 0)),
            pl.BlockSpec((TM, 1), lambda i, j: (i, 0)),
        ],
        out_specs=pl.BlockSpec((TM, TL), lambda i, j: (i, j)),
        compiler_params=pltpu.CompilerParams(
            dimension_semantics=("parallel", "parallel"),
            vmem_limit_bytes=32 * 1024 * 1024,
        ),
    )(x2, shift_col, inv_col)

    return out2.reshape(N, C, H, W)


if __name__ == "__main__":
    # Deterministic buffers exactly as in the PyTorch module __init__.
    shift = jnp.array([-0.030, -0.088, -0.188], dtype=jnp.float32)
    scale = jnp.array([0.458, 0.448, 0.450], dtype=jnp.float32)

    # Small deterministic input: batch=2, channels=3 (fixed by the module), 16x16 spatial.
    key = jax.random.PRNGKey(0)
    x = jax.random.normal(key, (2, 3, 16, 16), dtype=jnp.float32)

    out = scaling_layer(x, shift, scale)
    out = jax.block_until_ready(out)

    # Reference check in plain JAX (same broadcasting as PyTorch NCHW).
    ref = (x - shift[None, :, None, None]) / scale[None, :, None, None]
    assert out.shape == x.shape and out.dtype == x.dtype
    assert jnp.allclose(out, ref, rtol=1e-5, atol=1e-5), "mismatch vs reference"

    print("KERNEL_OK")
</pallas_src>

<mosaic_0001>
module attributes {stable_mosaic.version = 11 : i64} {
  func.func @_scaling_kernel(%arg0: i32, %arg1: i32, %arg2: memref<6x256xf32, #tpu.memory_space<vmem>>, %arg3: memref<6x1xf32, #tpu.memory_space<vmem>>, %arg4: memref<6x1xf32, #tpu.memory_space<vmem>>, %arg5: memref<6x256xf32, #tpu.memory_space<vmem>>) attributes {dimension_semantics = [#tpu.dimension_semantics<parallel>, #tpu.dimension_semantics<parallel>], iteration_bounds = array<i64: 1, 1>, scalar_prefetch = 0 : i64, scratch_operands = 0 : i64, tpu.core_type = #tpu.core_type<tc>, window_params = [{transform_indices = @transform_0, window_bounds = array<i64: 6, 256>}, {transform_indices = @transform_1, window_bounds = array<i64: 6, 1>}, {transform_indices = @transform_2, window_bounds = array<i64: 6, 1>}, {transform_indices = @transform_3, window_bounds = array<i64: 6, 256>}]} {
    %c0 = arith.constant 0 : index
    %c0_0 = arith.constant 0 : index
    %0 = vector.load %arg2[%c0, %c0_0] : memref<6x256xf32, #tpu.memory_space<vmem>>, vector<6x256xf32>
    %c0_1 = arith.constant 0 : index
    %c0_2 = arith.constant 0 : index
    %1 = vector.load %arg3[%c0_1, %c0_2] : memref<6x1xf32, #tpu.memory_space<vmem>>, vector<6x1xf32>
    %2 = vector.broadcast %1 : vector<6x1xf32> to vector<6x256xf32>
    %3 = arith.subf %0, %2 : vector<6x256xf32>
    %c0_3 = arith.constant 0 : index
    %c0_4 = arith.constant 0 : index
    %4 = vector.load %arg4[%c0_3, %c0_4] : memref<6x1xf32, #tpu.memory_space<vmem>>, vector<6x1xf32>
    %5 = vector.broadcast %4 : vector<6x1xf32> to vector<6x256xf32>
    %6 = arith.mulf %3, %5 : vector<6x256xf32>
    %c0_5 = arith.constant 0 : index
    %c0_6 = arith.constant 0 : index
    %7 = vector.load %arg5[%c0_5, %c0_6] : memref<6x256xf32, #tpu.memory_space<vmem>>, vector<6x256xf32>
    tpu.vector_store %arg5[%c0_5, %c0_6], %6 {strides = array<i32>} : memref<6x256xf32, #tpu.memory_space<vmem>>, vector<6x256xf32>,
    return
  }
  func.func @transform_0(%arg0: i32, %arg1: i32) -> (i32, i32) {
    %c0_i32 = arith.constant 0 : i32
    return %arg0, %arg1 : i32, i32
  }
  func.func @transform_1(%arg0: i32, %arg1: i32) -> (i32, i32) {
    %c0_i32 = arith.constant 0 : i32
    %c0_i32_0 = arith.constant 0 : i32
    return %arg0, %c0_i32 : i32, i32
  }
  func.func @transform_2(%arg0: i32, %arg1: i32) -> (i32, i32) {
    %c0_i32 = arith.constant 0 : i32
    %c0_i32_0 = arith.constant 0 : i32
    return %arg0, %c0_i32 : i32, i32
  }
  func.func @transform_3(%arg0: i32, %arg1: i32) -> (i32, i32) {
    %c0_i32 = arith.constant 0 : i32
    return %arg0, %arg1 : i32, i32
  }
}

</mosaic_0001>

<llo_original>
// kernel: tpu_custom_call.1
$region0: #{tpu_custom_call.1}
  #allocation0 [shape = 'u32[]', space=smem, size = 0x4, offset = 0x4, fixed_abs, tag = 'smem constant byte address 0x4 - core index']
  #allocation1 [shape = 'u32[144,128]{1,0:T(1,128)}', space=vmem, size = 0x12000, scoped, tag = 'internal scratch']
  %s0 = inlined_call_operand.vmem [shape: f32[6,256], index: 0, kind: input, shape index: {}]
  %s1 = inlined_call_operand.vmem [shape: f32[6,1], index: 1, kind: input, shape index: {}]
  %s2 = inlined_call_operand.vmem [shape: f32[6,1], index: 2, kind: input, shape index: {}]
  %s3 = inlined_call_operand.hbm [shape: f32[6,256], index: 3, kind: output, shape index: {}]
  %s4 = sld [smem:[#allocation0]]
  $region22: #{tpu_custom_call.1} parent=0
    _
  %s6 = ssub.s32 1, %s4
  %s7 = scalar_select 0, %s6, %s4
  $region1: #{tpu_custom_call.1} parent=0
    #allocation2 [shape = 'u8[8192]{0}', space=vmem, size = 0x2000, scoped, tag = 'output window, operand 0, single buffered']
    #allocation3 [shape = 's32[1]{0}', space=sflag, size = 0x4, scoped, tag = 'scoped memory for tpu_custom_call.1']
    %8 = vsyncpa [#allocation3], 0
    // Predicated region
    $region2: #{tpu_custom_call.1} parent=1 // pred_check
      _
    $region3: #{tpu_custom_call.1} parent=1 // pred_check_branch
      %10 = sbr.rel (0) target = $region5
    $region4: #{tpu_custom_call.1} parent=1 // pred_region
      _
    $region5: #{tpu_custom_call.1} parent=1 // pred_fallthru
      _
    // Predicated region
    $region6: #{tpu_custom_call.1} parent=1 // pred_check
      _
    $region7: #{tpu_custom_call.1} parent=1 // pred_check_branch
      %12 = sbr.rel (0) target = $region9
    $region8: #{tpu_custom_call.1} parent=1 // pred_region
      _
    $region9: #{tpu_custom_call.1} parent=1 // pred_fallthru
      _
    // Predicated region
    $region10: #{tpu_custom_call.1} parent=1 // pred_check
      _
    $region11: #{tpu_custom_call.1} parent=1 // pred_check_branch
      %14 = sbr.rel (0) target = $region13
    $region12: #{tpu_custom_call.1} parent=1 // pred_region
      _
    $region13: #{tpu_custom_call.1} parent=1 // pred_fallthru
      _
    %v15 = vld [vmem:[%s0] sm:$0x3f]
    %v16 = vld [vmem:[%s0 + $0x8] sm:$0x3f]
    %v17 = vld [vmem:[%s1] sm:$0x3f]
    %19 = vset.pattern.permute.xlu0 0
    %20 = vperm.xlu0 %19, %v17
    %v21 = vpop.permute.xlu0 %20
    %v23 = vsub.f32 %v15, %v21
    %v24 = vsub.f32 %v16, %v21
    %v25 = vld [vmem:[%s2] sm:$0x3f]
    %27 = vset.pattern.permute.xlu0 0
    %28 = vperm.xlu0 %27, %v25
    %v29 = vpop.permute.xlu0 %28
    %v31 = vmul.f32 %v23, %v29
    %v32 = vmul.f32 %v24, %v29
    %33 = vst [vmem:[#allocation2] sm:$0x3f] %v31
    %34 = vst [vmem:[#allocation2 + $0x8] sm:$0x3f] %v32
    // Predicated region
    $region14: #{tpu_custom_call.1} parent=1 // pred_check
      _
    $region15: #{tpu_custom_call.1} parent=1 // pred_check_branch
      %36 = sbr.rel (0) target = $region17
    $region16: #{tpu_custom_call.1} parent=1 // pred_region
      %s38 = ssub.s32 256, 256
      %39 = vsyncadd [#allocation3], %s38
      %s41 = sshll.u32 [#allocation2], 4
      %s42 = int_to_ptr.vmem [resolvable:$true] %s41
      %44 = dma.vmem_to_hbm [thread:$0]  %s42, 256, %s3, [#allocation3]
    $region17: #{tpu_custom_call.1} parent=1 // pred_fallthru
      _
    // Predicated region
    $region18: #{tpu_custom_call.1} parent=1 // pred_check
      _
    $region19: #{tpu_custom_call.1} parent=1 // pred_check_branch
      %46 = sbr.rel (0) target = $region21
    $region20: #{tpu_custom_call.1} parent=1 // pred_region
      %47 = dma.done [#allocation3], 256
    $region21: #{tpu_custom_call.1} parent=1 // pred_fallthru
      _
    %48 = vsyncpa [#allocation3], 1

</llo_original>
